<compile_context>
chip_gen: v7x
topology: tpu7x:2x2x1
jax: 0.10.0
libtpu: 0.0.40
codegen_flags: <defaults>
</compile_context>

<pallas_src>
import numpy as np
import jax
import jax.numpy as jnp
from jax.experimental import pallas as pl
from jax.experimental.pallas import tpu as pltpu

LANES = 128            # vreg lane width (frames per row)
SUB = 8                # minimum sublane granularity
MAX_BLOCK_ROWS = 256   # rows of 128 frames per grid step (256*128 = 32768 frames)


def _round_up(x, m):
    return ((x + m - 1) // m) * m


def pose_kernel(in_ref, out_ref):
    """in_ref: (6, R, 128) f32  [rx, ry, rz, tx, ty, tz] slabs.
    out_ref: (12, R, 128) f32  row-major [R | t] (3x4) per frame."""
    deg = jnp.float32(np.pi / 180.0)

    # One batched tanh over the fused (6, R, 128) block (single EUP pass).
    th = jnp.tanh(in_ref[...])
    rx = deg * th[0]
    ry = deg * th[1]
    rz = deg * th[2]

    # --- axis-angle -> quaternion (pytorch3d semantics, incl. small-angle Taylor) ---
    angle_sq = rx * rx + ry * ry + rz * rz
    angle = jnp.sqrt(angle_sq)
    half = jnp.float32(0.5) * angle
    small = angle < jnp.float32(1e-6)
    safe_angle = jnp.where(small, jnp.float32(1.0), angle)
    # 1/angle via EUP approx reciprocal + one Newton step (VPU) -> ~f32-exact.
    inv = pl.reciprocal(safe_angle, approx=True)
    inv = inv * (jnp.float32(2.0) - safe_angle * inv)
    s = jnp.where(small,
                  jnp.float32(0.5) - angle_sq * jnp.float32(1.0 / 48.0),
                  jnp.sin(half) * inv)

    qr = jnp.cos(half)
    qi = rx * s
    qj = ry * s
    qk = rz * s

    # quaternion -> rotation matrix.  The quaternion is unit by construction
    # (cos^2(h) + sin^2(h) = 1), so two_s = 2/|q|^2 == 2 exactly (analytically).
    two = jnp.float32(2.0)
    one = jnp.float32(1.0)
    tscale = jnp.float32(0.2)

    # Direct per-row stores of the flattened row-major 3x4 [R | t].
    out_ref[0] = one - two * (qj * qj + qk * qk)
    out_ref[1] = two * (qi * qj - qk * qr)
    out_ref[2] = two * (qi * qk + qj * qr)
    out_ref[3] = tscale * th[3]
    out_ref[4] = two * (qi * qj + qk * qr)
    out_ref[5] = one - two * (qi * qi + qk * qk)
    out_ref[6] = two * (qj * qk - qi * qr)
    out_ref[7] = tscale * th[4]
    out_ref[8] = two * (qi * qk - qj * qr)
    out_ref[9] = two * (qj * qk + qi * qr)
    out_ref[10] = one - two * (qi * qi + qj * qj)
    out_ref[11] = tscale * th[5]


def pose_model_forward(rotations, translations, idx=None):
    """Equivalent of PoseModel.forward(idx).

    rotations, translations: (num_frame, 3) float32
    idx: optional integer index array (or None for all frames)
    returns: (N, 4, 4) float32 pose matrices
    """
    rot = jnp.asarray(rotations, jnp.float32)
    tra = jnp.asarray(translations, jnp.float32)
    if idx is not None:
        # TODO(synk): per-frame gather stays in plain JAX; a lane-dense BlockSpec
        # index_map cannot express an arbitrary per-frame (sub-128) gather.
        rot = rot[idx]
        tra = tra[idx]
    n = rot.shape[0]

    rows_needed = pl.cdiv(n, LANES)                           # rows of 128 frames
    block_rows = min(MAX_BLOCK_ROWS, _round_up(rows_needed, SUB))
    rows = _round_up(rows_needed, block_rows)
    n_pad = rows * LANES

    # Fused lane-dense input slab: (6, rows, 128). Zero padding is safe:
    # tanh(0)=0 -> identity rotation, zero translation.
    params = jnp.concatenate([rot, tra], axis=1).T            # (6, N)
    if n_pad != n:
        params = jnp.pad(params, ((0, 0), (0, n_pad - n)))
    slab = params.reshape(6, rows, LANES)

    out = pl.pallas_call(
        pose_kernel,
        out_shape=jax.ShapeDtypeStruct((12, rows, LANES), jnp.float32),
        grid=(rows // block_rows,),
        in_specs=[pl.BlockSpec((6, block_rows, LANES), lambda i: (0, i, 0))],
        out_specs=pl.BlockSpec((12, block_rows, LANES), lambda i: (0, i, 0)),
        compiler_params=pltpu.CompilerParams(
            dimension_semantics=("parallel",)),
    )(slab)

    # Layout glue only: reshape the 12-row slab to PyTorch-shaped (N, 4, 4) and
    # synthesize the constant bottom row.  Consumers that accept (12, N) (or
    # (N, 3, 4)) directly can skip this extra HBM pass.
    flat = out.reshape(12, n_pad)[:, :n]                      # (12, N)
    top = flat.T.reshape(n, 3, 4)                             # (N, 3, 4)
    bottom = jnp.broadcast_to(
        jnp.array([0.0, 0.0, 0.0, 1.0], jnp.float32), (n, 1, 4))
    return jnp.concatenate([top, bottom], axis=1)             # (N, 4, 4)


def _reference_forward(rotations, translations, idx=None):
    """Pure-numpy reference reproducing the PyTorch forward math."""
    rotations = np.asarray(rotations, np.float64)
    translations = np.asarray(translations, np.float64)
    if idx is not None:
        rotations = rotations[np.asarray(idx)]
        translations = translations[np.asarray(idx)]
    ax = (np.pi / 180.0) * np.tanh(rotations)             # (N, 3)
    t = 0.2 * np.tanh(translations)[..., None]            # (N, 3, 1)

    angle = np.linalg.norm(ax, axis=-1, keepdims=True)    # (N, 1)
    half = 0.5 * angle
    small = np.abs(angle) < 1e-6
    s = np.where(small, 0.5 - angle ** 2 / 48.0,
                 np.sin(half) / np.where(small, 1.0, angle))
    quat = np.concatenate([np.cos(half), ax * s], axis=-1)  # (N, 4)
    r, i, j, k = quat[:, 0], quat[:, 1], quat[:, 2], quat[:, 3]
    two_s = 2.0 / (quat * quat).sum(-1)
    R = np.stack([
        1 - two_s * (j * j + k * k), two_s * (i * j - k * r), two_s * (i * k + j * r),
        two_s * (i * j + k * r), 1 - two_s * (i * i + k * k), two_s * (j * k - i * r),
        two_s * (i * k - j * r), two_s * (j * k + i * r), 1 - two_s * (i * i + j * j),
    ], axis=-1).reshape(-1, 3, 3)

    pose34 = np.concatenate([R, t], axis=2)                # (N, 3, 4)
    bottom = np.zeros((pose34.shape[0], 1, 4))
    poses = np.concatenate([pose34, bottom], axis=1)
    poses[:, 3, 3] = 1.0
    return poses.astype(np.float32)


if __name__ == "__main__":
    key = jax.random.PRNGKey(0)
    k1, k2 = jax.random.split(key)

    num_frame = 8
    # Deterministic synthetic "parameters" (module __init__ uses zeros; random
    # values used here to exercise the nontrivial math path).
    rotations = jax.random.normal(k1, (num_frame, 3), jnp.float32)
    translations = jax.random.normal(k2, (num_frame, 3), jnp.float32)

    idx = jnp.array([0, 2, 5, 7], dtype=jnp.int32)

    # idx path
    poses = jax.block_until_ready(pose_model_forward(rotations, translations, idx))
    assert poses.shape == (4, 4, 4) and poses.dtype == jnp.float32
    ref = _reference_forward(np.array(rotations), np.array(translations), np.array(idx))
    np.testing.assert_allclose(np.array(poses), ref, rtol=1e-5, atol=1e-5)

    # idx=None path (all frames)
    poses_all = jax.block_until_ready(pose_model_forward(rotations, translations, None))
    assert poses_all.shape == (num_frame, 4, 4)
    ref_all = _reference_forward(np.array(rotations), np.array(translations), None)
    np.testing.assert_allclose(np.array(poses_all), ref_all, rtol=1e-5, atol=1e-5)

    # Larger case crossing a 128-lane boundary (still small/fast): checks
    # padding + adaptive block-row selection.
    k3, k4 = jax.random.split(k2)
    rot_big = jax.random.normal(k3, (300, 3), jnp.float32)
    tra_big = jax.random.normal(k4, (300, 3), jnp.float32)
    poses_big = jax.block_until_ready(pose_model_forward(rot_big, tra_big, None))
    ref_big = _reference_forward(np.array(rot_big), np.array(tra_big), None)
    np.testing.assert_allclose(np.array(poses_big), ref_big, rtol=1e-5, atol=1e-5)

    print("KERNEL_OK")
</pallas_src>

<mosaic_0001>
module attributes {stable_mosaic.version = 11 : i64} {
  func.func @pose_kernel(%arg0: i32, %arg1: memref<6x8x128xf32, #tpu.memory_space<vmem>>, %arg2: memref<12x8x128xf32, #tpu.memory_space<vmem>>) attributes {dimension_semantics = [#tpu.dimension_semantics<parallel>], iteration_bounds = array<i64: 1>, scalar_prefetch = 0 : i64, scratch_operands = 0 : i64, tpu.core_type = #tpu.core_type<tc>, window_params = [{transform_indices = @transform_0, window_bounds = array<i64: 6, 8, 128>}, {transform_indices = @transform_1, window_bounds = array<i64: 12, 8, 128>}]} {
    %c0 = arith.constant 0 : index
    %c0_0 = arith.constant 0 : index
    %c0_1 = arith.constant 0 : index
    %0 = vector.load %arg1[%c0, %c0_0, %c0_1] : memref<6x8x128xf32, #tpu.memory_space<vmem>>, vector<6x8x128xf32>
    %1 = math.tanh %0 : vector<6x8x128xf32>
    %2 = vector.extract_strided_slice %1 {offsets = [0, 0, 0], sizes = [1, 8, 128], strides = [1, 1, 1]} : vector<6x8x128xf32> to vector<1x8x128xf32>
    %3 = vector.shape_cast %2 : vector<1x8x128xf32> to vector<8x128xf32>
    %cst = arith.constant 0.0174532924 : f32
    %4 = vector.broadcast %cst : f32 to vector<8x128xf32>
    %5 = arith.mulf %4, %3 : vector<8x128xf32>
    %6 = vector.extract_strided_slice %1 {offsets = [1, 0, 0], sizes = [1, 8, 128], strides = [1, 1, 1]} : vector<6x8x128xf32> to vector<1x8x128xf32>
    %7 = vector.shape_cast %6 : vector<1x8x128xf32> to vector<8x128xf32>
    %cst_2 = arith.constant 0.0174532924 : f32
    %8 = vector.broadcast %cst_2 : f32 to vector<8x128xf32>
    %9 = arith.mulf %8, %7 : vector<8x128xf32>
    %10 = vector.extract_strided_slice %1 {offsets = [2, 0, 0], sizes = [1, 8, 128], strides = [1, 1, 1]} : vector<6x8x128xf32> to vector<1x8x128xf32>
    %11 = vector.shape_cast %10 : vector<1x8x128xf32> to vector<8x128xf32>
    %cst_3 = arith.constant 0.0174532924 : f32
    %12 = vector.broadcast %cst_3 : f32 to vector<8x128xf32>
    %13 = arith.mulf %12, %11 : vector<8x128xf32>
    %14 = arith.mulf %5, %5 : vector<8x128xf32>
    %15 = arith.mulf %9, %9 : vector<8x128xf32>
    %16 = arith.addf %14, %15 : vector<8x128xf32>
    %17 = arith.mulf %13, %13 : vector<8x128xf32>
    %18 = arith.addf %16, %17 : vector<8x128xf32>
    %19 = math.sqrt %18 : vector<8x128xf32>
    %cst_4 = arith.constant 5.000000e-01 : f32
    %20 = vector.broadcast %cst_4 : f32 to vector<8x128xf32>
    %21 = arith.mulf %20, %19 : vector<8x128xf32>
    %cst_5 = arith.constant 9.99999997E-7 : f32
    %22 = vector.broadcast %cst_5 : f32 to vector<8x128xf32>
    %23 = arith.cmpf olt, %19, %22 : vector<8x128xf32>
    %cst_6 = arith.constant 1.000000e+00 : f32
    %24 = vector.broadcast %cst_6 : f32 to vector<8x128xf32>
    %25 = arith.select %23, %24, %19 : vector<8x128xi1>, vector<8x128xf32>
    %26 = tpu.reciprocal %25 {approx = true} : vector<8x128xf32> -> vector<8x128xf32>
    %27 = arith.mulf %25, %26 : vector<8x128xf32>
    %cst_7 = arith.constant 2.000000e+00 : f32
    %28 = vector.broadcast %cst_7 : f32 to vector<8x128xf32>
    %29 = arith.subf %28, %27 : vector<8x128xf32>
    %30 = arith.mulf %26, %29 : vector<8x128xf32>
    %cst_8 = arith.constant 0.020833334 : f32
    %31 = vector.broadcast %cst_8 : f32 to vector<8x128xf32>
    %32 = arith.mulf %18, %31 : vector<8x128xf32>
    %cst_9 = arith.constant 5.000000e-01 : f32
    %33 = vector.broadcast %cst_9 : f32 to vector<8x128xf32>
    %34 = arith.subf %33, %32 : vector<8x128xf32>
    %35 = math.sin %21 : vector<8x128xf32>
    %36 = arith.mulf %35, %30 : vector<8x128xf32>
    %37 = arith.select %23, %34, %36 : vector<8x128xi1>, vector<8x128xf32>
    %38 = math.cos %21 : vector<8x128xf32>
    %39 = arith.mulf %5, %37 : vector<8x128xf32>
    %40 = arith.mulf %9, %37 : vector<8x128xf32>
    %41 = arith.mulf %13, %37 : vector<8x128xf32>
    %42 = arith.mulf %40, %40 : vector<8x128xf32>
    %43 = arith.mulf %41, %41 : vector<8x128xf32>
    %44 = arith.addf %42, %43 : vector<8x128xf32>
    %cst_10 = arith.constant 2.000000e+00 : f32
    %45 = vector.broadcast %cst_10 : f32 to vector<8x128xf32>
    %46 = arith.mulf %45, %44 : vector<8x128xf32>
    %cst_11 = arith.constant 1.000000e+00 : f32
    %47 = vector.broadcast %cst_11 : f32 to vector<8x128xf32>
    %48 = arith.subf %47, %46 : vector<8x128xf32>
    %c0_12 = arith.constant 0 : index
    %c0_13 = arith.constant 0 : index
    %c0_14 = arith.constant 0 : index
    %49 = vector.load %arg2[%c0_12, %c0_13, %c0_14] : memref<12x8x128xf32, #tpu.memory_space<vmem>>, vector<1x8x128xf32>
    %50 = vector.shape_cast %49 : vector<1x8x128xf32> to vector<8x128xf32>
    %51 = vector.shape_cast %48 : vector<8x128xf32> to vector<1x8x128xf32>
    tpu.vector_store %arg2[%c0_12, %c0_13, %c0_14], %51 {strides = array<i32>} : memref<12x8x128xf32, #tpu.memory_space<vmem>>, vector<1x8x128xf32>,
    %52 = arith.mulf %39, %40 : vector<8x128xf32>
    %53 = arith.mulf %41, %38 : vector<8x128xf32>
    %54 = arith.subf %52, %53 : vector<8x128xf32>
    %cst_15 = arith.constant 2.000000e+00 : f32
    %55 = vector.broadcast %cst_15 : f32 to vector<8x128xf32>
    %56 = arith.mulf %55, %54 : vector<8x128xf32>
    %c1 = arith.constant 1 : index
    %c0_16 = arith.constant 0 : index
    %c0_17 = arith.constant 0 : index
    %57 = vector.load %arg2[%c1, %c0_16, %c0_17] : memref<12x8x128xf32, #tpu.memory_space<vmem>>, vector<1x8x128xf32>
    %58 = vector.shape_cast %57 : vector<1x8x128xf32> to vector<8x128xf32>
    %59 = vector.shape_cast %56 : vector<8x128xf32> to vector<1x8x128xf32>
    tpu.vector_store %arg2[%c1, %c0_16, %c0_17], %59 {strides = array<i32>} : memref<12x8x128xf32, #tpu.memory_space<vmem>>, vector<1x8x128xf32>,
    %60 = arith.mulf %39, %41 : vector<8x128xf32>
    %61 = arith.mulf %40, %38 : vector<8x128xf32>
    %62 = arith.addf %60, %61 : vector<8x128xf32>
    %cst_18 = arith.constant 2.000000e+00 : f32
    %63 = vector.broadcast %cst_18 : f32 to vector<8x128xf32>
    %64 = arith.mulf %63, %62 : vector<8x128xf32>
    %c2 = arith.constant 2 : index
    %c0_19 = arith.constant 0 : index
    %c0_20 = arith.constant 0 : index
    %65 = vector.load %arg2[%c2, %c0_19, %c0_20] : memref<12x8x128xf32, #tpu.memory_space<vmem>>, vector<1x8x128xf32>
    %66 = vector.shape_cast %65 : vector<1x8x128xf32> to vector<8x128xf32>
    %67 = vector.shape_cast %64 : vector<8x128xf32> to vector<1x8x128xf32>
    tpu.vector_store %arg2[%c2, %c0_19, %c0_20], %67 {strides = array<i32>} : memref<12x8x128xf32, #tpu.memory_space<vmem>>, vector<1x8x128xf32>,
    %68 = vector.extract_strided_slice %1 {offsets = [3, 0, 0], sizes = [1, 8, 128], strides = [1, 1, 1]} : vector<6x8x128xf32> to vector<1x8x128xf32>
    %69 = vector.shape_cast %68 : vector<1x8x128xf32> to vector<8x128xf32>
    %cst_21 = arith.constant 2.000000e-01 : f32
    %70 = vector.broadcast %cst_21 : f32 to vector<8x128xf32>
    %71 = arith.mulf %70, %69 : vector<8x128xf32>
    %c3 = arith.constant 3 : index
    %c0_22 = arith.constant 0 : index
    %c0_23 = arith.constant 0 : index
    %72 = vector.load %arg2[%c3, %c0_22, %c0_23] : memref<12x8x128xf32, #tpu.memory_space<vmem>>, vector<1x8x128xf32>
    %73 = vector.shape_cast %72 : vector<1x8x128xf32> to vector<8x128xf32>
    %74 = vector.shape_cast %71 : vector<8x128xf32> to vector<1x8x128xf32>
    tpu.vector_store %arg2[%c3, %c0_22, %c0_23], %74 {strides = array<i32>} : memref<12x8x128xf32, #tpu.memory_space<vmem>>, vector<1x8x128xf32>,
    %75 = arith.mulf %39, %40 : vector<8x128xf32>
    %76 = arith.mulf %41, %38 : vector<8x128xf32>
    %77 = arith.addf %75, %76 : vector<8x128xf32>
    %cst_24 = arith.constant 2.000000e+00 : f32
    %78 = vector.broadcast %cst_24 : f32 to vector<8x128xf32>
    %79 = arith.mulf %78, %77 : vector<8x128xf32>
    %c4 = arith.constant 4 : index
    %c0_25 = arith.constant 0 : index
    %c0_26 = arith.constant 0 : index
    %80 = vector.load %arg2[%c4, %c0_25, %c0_26] : memref<12x8x128xf32, #tpu.memory_space<vmem>>, vector<1x8x128xf32>
    %81 = vector.shape_cast %80 : vector<1x8x128xf32> to vector<8x128xf32>
    %82 = vector.shape_cast %79 : vector<8x128xf32> to vector<1x8x128xf32>
    tpu.vector_store %arg2[%c4, %c0_25, %c0_26], %82 {strides = array<i32>} : memref<12x8x128xf32, #tpu.memory_space<vmem>>, vector<1x8x128xf32>,
    %83 = arith.mulf %39, %39 : vector<8x128xf32>
    %84 = arith.mulf %41, %41 : vector<8x128xf32>
    %85 = arith.addf %83, %84 : vector<8x128xf32>
    %cst_27 = arith.constant 2.000000e+00 : f32
    %86 = vector.broadcast %cst_27 : f32 to vector<8x128xf32>
    %87 = arith.mulf %86, %85 : vector<8x128xf32>
    %cst_28 = arith.constant 1.000000e+00 : f32
    %88 = vector.broadcast %cst_28 : f32 to vector<8x128xf32>
    %89 = arith.subf %88, %87 : vector<8x128xf32>
    %c5 = arith.constant 5 : index
    %c0_29 = arith.constant 0 : index
    %c0_30 = arith.constant 0 : index
    %90 = vector.load %arg2[%c5, %c0_29, %c0_30] : memref<12x8x128xf32, #tpu.memory_space<vmem>>, vector<1x8x128xf32>
    %91 = vector.shape_cast %90 : vector<1x8x128xf32> to vector<8x128xf32>
    %92 = vector.shape_cast %89 : vector<8x128xf32> to vector<1x8x128xf32>
    tpu.vector_store %arg2[%c5, %c0_29, %c0_30], %92 {strides = array<i32>} : memref<12x8x128xf32, #tpu.memory_space<vmem>>, vector<1x8x128xf32>,
    %93 = arith.mulf %40, %41 : vector<8x128xf32>
    %94 = arith.mulf %39, %38 : vector<8x128xf32>
    %95 = arith.subf %93, %94 : vector<8x128xf32>
    %cst_31 = arith.constant 2.000000e+00 : f32
    %96 = vector.broadcast %cst_31 : f32 to vector<8x128xf32>
    %97 = arith.mulf %96, %95 : vector<8x128xf32>
    %c6 = arith.constant 6 : index
    %c0_32 = arith.constant 0 : index
    %c0_33 = arith.constant 0 : index
    %98 = vector.load %arg2[%c6, %c0_32, %c0_33] : memref<12x8x128xf32, #tpu.memory_space<vmem>>, vector<1x8x128xf32>
    %99 = vector.shape_cast %98 : vector<1x8x128xf32> to vector<8x128xf32>
    %100 = vector.shape_cast %97 : vector<8x128xf32> to vector<1x8x128xf32>
    tpu.vector_store %arg2[%c6, %c0_32, %c0_33], %100 {strides = array<i32>} : memref<12x8x128xf32, #tpu.memory_space<vmem>>, vector<1x8x128xf32>,
    %101 = vector.extract_strided_slice %1 {offsets = [4, 0, 0], sizes = [1, 8, 128], strides = [1, 1, 1]} : vector<6x8x128xf32> to vector<1x8x128xf32>
    %102 = vector.shape_cast %101 : vector<1x8x128xf32> to vector<8x128xf32>
    %cst_34 = arith.constant 2.000000e-01 : f32
    %103 = vector.broadcast %cst_34 : f32 to vector<8x128xf32>
    %104 = arith.mulf %103, %102 : vector<8x128xf32>
    %c7 = arith.constant 7 : index
    %c0_35 = arith.constant 0 : index
    %c0_36 = arith.constant 0 : index
    %105 = vector.load %arg2[%c7, %c0_35, %c0_36] : memref<12x8x128xf32, #tpu.memory_space<vmem>>, vector<1x8x128xf32>
    %106 = vector.shape_cast %105 : vector<1x8x128xf32> to vector<8x128xf32>
    %107 = vector.shape_cast %104 : vector<8x128xf32> to vector<1x8x128xf32>
    tpu.vector_store %arg2[%c7, %c0_35, %c0_36], %107 {strides = array<i32>} : memref<12x8x128xf32, #tpu.memory_space<vmem>>, vector<1x8x128xf32>,
    %108 = arith.mulf %39, %41 : vector<8x128xf32>
    %109 = arith.mulf %40, %38 : vector<8x128xf32>
    %110 = arith.subf %108, %109 : vector<8x128xf32>
    %cst_37 = arith.constant 2.000000e+00 : f32
    %111 = vector.broadcast %cst_37 : f32 to vector<8x128xf32>
    %112 = arith.mulf %111, %110 : vector<8x128xf32>
    %c8 = arith.constant 8 : index
    %c0_38 = arith.constant 0 : index
    %c0_39 = arith.constant 0 : index
    %113 = vector.load %arg2[%c8, %c0_38, %c0_39] : memref<12x8x128xf32, #tpu.memory_space<vmem>>, vector<1x8x128xf32>
    %114 = vector.shape_cast %113 : vector<1x8x128xf32> to vector<8x128xf32>
    %115 = vector.shape_cast %112 : vector<8x128xf32> to vector<1x8x128xf32>
    tpu.vector_store %arg2[%c8, %c0_38, %c0_39], %115 {strides = array<i32>} : memref<12x8x128xf32, #tpu.memory_space<vmem>>, vector<1x8x128xf32>,
    %116 = arith.mulf %40, %41 : vector<8x128xf32>
    %117 = arith.mulf %39, %38 : vector<8x128xf32>
    %118 = arith.addf %116, %117 : vector<8x128xf32>
    %cst_40 = arith.constant 2.000000e+00 : f32
    %119 = vector.broadcast %cst_40 : f32 to vector<8x128xf32>
    %120 = arith.mulf %119, %118 : vector<8x128xf32>
    %c9 = arith.constant 9 : index
    %c0_41 = arith.constant 0 : index
    %c0_42 = arith.constant 0 : index
    %121 = vector.load %arg2[%c9, %c0_41, %c0_42] : memref<12x8x128xf32, #tpu.memory_space<vmem>>, vector<1x8x128xf32>
    %122 = vector.shape_cast %121 : vector<1x8x128xf32> to vector<8x128xf32>
    %123 = vector.shape_cast %120 : vector<8x128xf32> to vector<1x8x128xf32>
    tpu.vector_store %arg2[%c9, %c0_41, %c0_42], %123 {strides = array<i32>} : memref<12x8x128xf32, #tpu.memory_space<vmem>>, vector<1x8x128xf32>,
    %124 = arith.mulf %39, %39 : vector<8x128xf32>
    %125 = arith.mulf %40, %40 : vector<8x128xf32>
    %126 = arith.addf %124, %125 : vector<8x128xf32>
    %cst_43 = arith.constant 2.000000e+00 : f32
    %127 = vector.broadcast %cst_43 : f32 to vector<8x128xf32>
    %128 = arith.mulf %127, %126 : vector<8x128xf32>
    %cst_44 = arith.constant 1.000000e+00 : f32
    %129 = vector.broadcast %cst_44 : f32 to vector<8x128xf32>
    %130 = arith.subf %129, %128 : vector<8x128xf32>
    %c10 = arith.constant 10 : index
    %c0_45 = arith.constant 0 : index
    %c0_46 = arith.constant 0 : index
    %131 = vector.load %arg2[%c10, %c0_45, %c0_46] : memref<12x8x128xf32, #tpu.memory_space<vmem>>, vector<1x8x128xf32>
    %132 = vector.shape_cast %131 : vector<1x8x128xf32> to vector<8x128xf32>
    %133 = vector.shape_cast %130 : vector<8x128xf32> to vector<1x8x128xf32>
    tpu.vector_store %arg2[%c10, %c0_45, %c0_46], %133 {strides = array<i32>} : memref<12x8x128xf32, #tpu.memory_space<vmem>>, vector<1x8x128xf32>,
    %134 = vector.extract_strided_slice %1 {offsets = [5, 0, 0], sizes = [1, 8, 128], strides = [1, 1, 1]} : vector<6x8x128xf32> to vector<1x8x128xf32>
    %135 = vector.shape_cast %134 : vector<1x8x128xf32> to vector<8x128xf32>
    %cst_47 = arith.constant 2.000000e-01 : f32
    %136 = vector.broadcast %cst_47 : f32 to vector<8x128xf32>
    %137 = arith.mulf %136, %135 : vector<8x128xf32>
    %c11 = arith.constant 11 : index
    %c0_48 = arith.constant 0 : index
    %c0_49 = arith.constant 0 : index
    %138 = vector.load %arg2[%c11, %c0_48, %c0_49] : memref<12x8x128xf32, #tpu.memory_space<vmem>>, vector<1x8x128xf32>
    %139 = vector.shape_cast %138 : vector<1x8x128xf32> to vector<8x128xf32>
    %140 = vector.shape_cast %137 : vector<8x128xf32> to vector<1x8x128xf32>
    tpu.vector_store %arg2[%c11, %c0_48, %c0_49], %140 {strides = array<i32>} : memref<12x8x128xf32, #tpu.memory_space<vmem>>, vector<1x8x128xf32>,
    return
  }
  func.func @transform_0(%arg0: i32) -> (i32, i32, i32) {
    %c0_i32 = arith.constant 0 : i32
    %c0_i32_0 = arith.constant 0 : i32
    %c0_i32_1 = arith.constant 0 : i32
    return %c0_i32, %arg0, %c0_i32_0 : i32, i32, i32
  }
  func.func @transform_1(%arg0: i32) -> (i32, i32, i32) {
    %c0_i32 = arith.constant 0 : i32
    %c0_i32_0 = arith.constant 0 : i32
    %c0_i32_1 = arith.constant 0 : i32
    return %c0_i32, %arg0, %c0_i32_0 : i32, i32, i32
  }
}

</mosaic_0001>

<llo_original>
// kernel: tpu_custom_call.1
$region0: #{tpu_custom_call.1}
  #allocation0 [shape = 'u32[]', space=smem, size = 0x4, offset = 0x4, fixed_abs, tag = 'smem constant byte address 0x4 - core index']
  #allocation1 [shape = 'u32[144,128]{1,0:T(1,128)}', space=vmem, size = 0x12000, scoped, tag = 'internal scratch']
  %s0 = inlined_call_operand.hbm [shape: f32[6,8,128], index: 0, kind: input, shape index: {}]
  %s1 = inlined_call_operand.hbm [shape: f32[12,8,128], index: 1, kind: output, shape index: {}]
  %s2 = sld [smem:[#allocation0]]
  $region18: #{tpu_custom_call.1} parent=0
    _
  %s4 = ssub.s32 1, %s2
  %s5 = scalar_select 0, %s4, %s2
  $region1: #{tpu_custom_call.1} parent=0
    #allocation2 [shape = 'u8[24576]{0}', space=vmem, size = 0x6000, scoped, tag = 'input window, operand 0, single buffered']
    #allocation3 [shape = 's32[1]{0}', space=sflag, size = 0x4, scoped, tag = 'scoped memory for tpu_custom_call.1']
    #allocation4 [shape = 's32[1]{0}', space=sflag, size = 0x4, scoped, tag = 'scoped memory for tpu_custom_call.1']
    #allocation5 [shape = 'u8[49152]{0}', space=vmem, size = 0xc000, scoped, tag = 'output window, operand 0, single buffered']
    %6 = vsyncpa [#allocation3], 0
    %7 = vsyncpa [#allocation4], 0
    // Predicated region
    $region2: #{tpu_custom_call.1} parent=1 // pred_check
      _
    $region3: #{tpu_custom_call.1} parent=1 // pred_check_branch
      %9 = sbr.rel (0) target = $region5
    $region4: #{tpu_custom_call.1} parent=1 // pred_region
      %s11 = ssub.s32 768, 768
      %12 = vsyncadd [#allocation3], %s11
      %s13 = sshll.u32 [#allocation2], 4
      %s14 = int_to_ptr.vmem [resolvable:$true] %s13
      %19 = dma.hbm_to_vmem [thread:$0]  %s0, 768, %s14, [#allocation3], 128, 128, 8
    $region5: #{tpu_custom_call.1} parent=1 // pred_fallthru
      _
    // Predicated region
    $region6: #{tpu_custom_call.1} parent=1 // pred_check
      _
    $region7: #{tpu_custom_call.1} parent=1 // pred_check_branch
      %21 = sbr.rel (0) target = $region9
    $region8: #{tpu_custom_call.1} parent=1 // pred_region
      %22 = dma.done [#allocation3], 768
    $region9: #{tpu_custom_call.1} parent=1 // pred_fallthru
      _
    %v23 = vld [vmem:[#allocation2] sm:$0xff]
    %v24 = vld [vmem:[#allocation2 + $0x8] sm:$0xff]
    %v25 = vld [vmem:[#allocation2 + $0x10] sm:$0xff]
    %v26 = vld [vmem:[#allocation2 + $0x18] sm:$0xff]
    %v27 = vld [vmem:[#allocation2 + $0x20] sm:$0xff]
    %v28 = vld [vmem:[#allocation2 + $0x28] sm:$0xff]
    %v29 = vtanh.pop %v23
    %v30 = vtanh.pop %v24
    %v31 = vtanh.pop %v25
    %v32 = vtanh.pop %v26
    %v33 = vtanh.pop %v27
    %v34 = vtanh.pop %v28
    %v35 = vmul.f32 %v29, 0.017453292
    %v36 = vmul.f32 %v30, 0.017453292
    %v37 = vmul.f32 %v31, 0.017453292
    %v38 = vmul.f32 %v35, %v35
    %v39 = vmul.f32 %v36, %v36
    %v40 = vadd.f32 %v38, %v39
    %v41 = vmul.f32 %v37, %v37
    %v42 = vadd.f32 %v40, %v41
    %v43 = vrsqrt.pop %v42
    %v44 = vmul.f32 %v42, %v43
    %vm45 = vcmp.eq.f32.partialorder %v42, inf
    %v46 = vsel %vm45, %v42, %v44
    %vm47 = vcmp.eq.f32.partialorder %v42, 0.0
    %v48 = vand.u32 %v42, 2147483648
    %v49 = vsel %vm47, %v48, %v46
    %v50 = vmul.f32 %v49, 0.5
    %vm51 = vcmp.lt.f32.partialorder %v49, 1e-06
    %v52 = vsel %vm51, 1.0, %v49
    %v53 = vrcp.pop %v52
    %v54 = vmul.f32 %v52, %v53
    %v55 = vsub.f32 2.0, %v54
    %v56 = vmul.f32 %v53, %v55
    %v57 = vmul.f32 %v42, 0.020833334
    %v58 = vsub.f32 0.5, %v57
    %v59 = vand.u32 2147483647, %v50
    %vm60 = vcmp.le.f32.partialorder %v59, 0.7853982
    %vm61 = vcmp.lt.s32.totalorder %v50, 0
    %v62 = vand.u32 %v50, 2139095040
    %v63 = vshrl.u32 %v62, 23
    %v64 = vsub.s32 %v63, 127
    %v65 = vand.u32 2147483647, %v50
    %v66 = vand.u32 %v65, 8388607
    %v67 = vor.u32 %v66, 8388608
    %v68 = vsub.s32 0, %v67
    %v69 = vadd.s32 %v64, 1
    %vm70 = vcmp.gt.s32.totalorder %v69, 0
    %v71 = vsel %vm70, %v69, 0
    %v72 = vshrl.u32 %v71, 5
    %v73 = vand.u32 %v71, 31
    %v74 = vsub.s32 32, %v73
    %v75 = vshrl.u32 683565275, %v74
    %v76 = vshll.u32 683565275, %v73
    %v77 = vshrl.u32 2475754826, %v74
    %v78 = vor.u32 %v76, %v77
    %v79 = vshll.u32 2475754826, %v73
    %v80 = vshrl.u32 2131351028, %v74
    %v81 = vor.u32 %v79, %v80
    %v82 = vshll.u32 2131351028, %v73
    %v83 = vshrl.u32 2102212464, %v74
    %v84 = vor.u32 %v82, %v83
    %v85 = vshll.u32 2102212464, %v73
    %v86 = vshrl.u32 920167782, %v74
    %v87 = vor.u32 %v85, %v86
    %v88 = vshll.u32 920167782, %v73
    %v89 = vshrl.u32 1326507024, %v74
    %v90 = vor.u32 %v88, %v89
    %vm91 = vcmp.lt.s32.totalorder %v72, 1
    %vm92 = vcmp.lt.s32.totalorder %v72, 2
    %vm93 = vcmp.lt.s32.totalorder %v72, 3
    %vm94 = vcmp.lt.s32.totalorder %v72, 4
    %v95 = vsel %vm91, %v75, %v78
    %v96 = vsel %vm94, %v84, 2102212464
    %v97 = vsel %vm93, %v81, %v96
    %v98 = vsel %vm92, %v95, %v97
    %v99 = vsel %vm91, %v78, %v81
    %v100 = vsel %vm94, %v87, 920167782
    %v101 = vsel %vm93, %v84, %v100
    %v102 = vsel %vm92, %v99, %v101
    %v103 = vsel %vm91, %v81, %v84
    %v104 = vsel %vm94, %v90, 1326507024
    %v105 = vsel %vm93, %v87, %v104
    %v106 = vsel %vm92, %v103, %v105
    %v107 = vshll.u32 %v67, 8
    %v108 = vmul.u32.u64.compose %v107, %v106
    %v109 = vextract.low.u32 %v108
    %v110 = vextract.high.u32 %v108
    %v111 = vmul.u32.u64.compose %v107, %v102
    %v112 = vextract.low.u32 %v111
    %v113 = vextract.high.u32 %v111
    %v114 = vmul.u32 %v107, %v98
    %v115 = vadd.s32 %v110, %v112
    %vm116 = vc.u32 %v110, %v112
    %v117 = vadd.s32 %v113, 1
    %v118 = vsel %vm116, %v117, %v113
    %v119 = vadd.s32 %v114, %v118
    %v120 = vadd.s32 %v119, 536870912
    %v121 = vshrl.u32 %v120, 30
    %v122 = vshll.u32 %v121, 30
    %v123 = vsub.s32 %v119, %v122
    %vm124 = vcmp.lt.s32.totalorder %v123, 0
    %v125 = vsub.s32 0, %v123
    %v126 = vsel %vm124, %v125, %v123
    %v127 = vclz %v126
    %v128 = vsub.s32 %v127, 2
    %vm129 = vcmp.gt.s32.totalorder 0, %v128
    %v130 = vsel %vm129, 0, %v128
    %v131 = vsub.s32 32, %v130
    %v132 = vshll.u32 %v123, %v130
    %v133 = vshrl.u32 %v115, %v131
    %v134 = vor.u32 %v132, %v133
    %v135 = vsub.s32 4294967266, %v130
    %v136 = vadd.s32 %v135, 127
    %v137 = vshll.u32 %v136, 23
    %v138 = vor.u32 4788187, %v137
    %v139 = vand.u32 2147483647, %v138
    %v141 = vcvt.s32.f32 %v134
    %v142 = vmul.f32 %v141, %v139
    %v143 = vxor.u32 %v142, 2147483648
    %v144 = vsel %vm61, %v143, %v142
    %v145 = vsub.s32 4, %v121
    %v146 = vsel %vm61, %v145, %v121
    %v147 = vsel %vm60, %v50, %v144
    %v148 = vsel %vm60, 0, %v146
    %v149 = vcosq.f32.pop %v147
    %v150 = vsinq.f32.pop %v147
    %vm151 = vweird.f32 %v50
    %v152 = vadd.s32 %v148, 3
    %v153 = vand.u32 %v152, 3
    %vm154 = vcmp.lt.s32.totalorder %v153, 2
    %vm155 = vcmp.eq.s32.totalorder %v153, 0
    %v156 = vxor.u32 %v150, 2147483648
    %v157 = vsel %vm155, %v149, %v156
    %vm158 = vcmp.eq.s32.totalorder %v153, 2
    %v159 = vxor.u32 %v149, 2147483648
    %v160 = vsel %vm158, %v159, %v150
    %v161 = vsel %vm154, %v157, %v160
    %v162 = vsel %vm151, nan, %v161
    %v163 = vmul.f32 %v162, %v56
    %v164 = vsel %vm51, %v58, %v163
    %v165 = vand.u32 2147483647, %v50
    %vm166 = vcmp.le.f32.partialorder %v165, 0.7853982
    %vm167 = vcmp.lt.s32.totalorder %v50, 0
    %v168 = vand.u32 %v50, 2139095040
    %v169 = vshrl.u32 %v168, 23
    %v170 = vsub.s32 %v169, 127
    %v171 = vand.u32 2147483647, %v50
    %v172 = vand.u32 %v171, 8388607
    %v173 = vor.u32 %v172, 8388608
    %v174 = vsub.s32 0, %v173
    %v175 = vadd.s32 %v170, 1
    %vm176 = vcmp.gt.s32.totalorder %v175, 0
    %v177 = vsel %vm176, %v175, 0
    %v178 = vshrl.u32 %v177, 5
    %v179 = vand.u32 %v177, 31
    %v180 = vsub.s32 32, %v179
    %v181 = vshrl.u32 683565275, %v180
    %v182 = vshll.u32 683565275, %v179
    %v183 = vshrl.u32 2475754826, %v180
    %v184 = vor.u32 %v182, %v183
    %v185 = vshll.u32 2475754826, %v179
    %v186 = vshrl.u32 2131351028, %v180
    %v187 = vor.u32 %v185, %v186
    %v188 = vshll.u32 2131351028, %v179
    %v189 = vshrl.u32 2102212464, %v180
    %v190 = vor.u32 %v188, %v189
    %v191 = vshll.u32 2102212464, %v179
    %v192 = vshrl.u32 920167782, %v180
    %v193 = vor.u32 %v191, %v192
    %v194 = vshll.u32 920167782, %v179
    %v195 = vshrl.u32 1326507024, %v180
    %v196 = vor.u32 %v194, %v195
    %vm197 = vcmp.lt.s32.totalorder %v178, 1
    %vm198 = vcmp.lt.s32.totalorder %v178, 2
    %vm199 = vcmp.lt.s32.totalorder %v178, 3
    %vm200 = vcmp.lt.s32.totalorder %v178, 4
    %v201 = vsel %vm197, %v181, %v184
    %v202 = vsel %vm200, %v190, 2102212464
    %v203 = vsel %vm199, %v187, %v202
    %v204 = vsel %vm198, %v201, %v203
    %v205 = vsel %vm197, %v184, %v187
    %v206 = vsel %vm200, %v193, 920167782
    %v207 = vsel %vm199, %v190, %v206
    %v208 = vsel %vm198, %v205, %v207
    %v209 = vsel %vm197, %v187, %v190
    %v210 = vsel %vm200, %v196, 1326507024
    %v211 = vsel %vm199, %v193, %v210
    %v212 = vsel %vm198, %v209, %v211
    %v213 = vshll.u32 %v173, 8
    %v214 = vmul.u32.u64.compose %v213, %v212
    %v215 = vextract.low.u32 %v214
    %v216 = vextract.high.u32 %v214
    %v217 = vmul.u32.u64.compose %v213, %v208
    %v218 = vextract.low.u32 %v217
    %v219 = vextract.high.u32 %v217
    %v220 = vmul.u32 %v213, %v204
    %v221 = vadd.s32 %v216, %v218
    %vm222 = vc.u32 %v216, %v218
    %v223 = vadd.s32 %v219, 1
    %v224 = vsel %vm222, %v223, %v219
    %v225 = vadd.s32 %v220, %v224
    %v226 = vadd.s32 %v225, 536870912
    %v227 = vshrl.u32 %v226, 30
    %v228 = vshll.u32 %v227, 30
    %v229 = vsub.s32 %v225, %v228
    %vm230 = vcmp.lt.s32.totalorder %v229, 0
    %v231 = vsub.s32 0, %v229
    %v232 = vsel %vm230, %v231, %v229
    %v233 = vclz %v232
    %v234 = vsub.s32 %v233, 2
    %vm235 = vcmp.gt.s32.totalorder 0, %v234
    %v236 = vsel %vm235, 0, %v234
    %v237 = vsub.s32 32, %v236
    %v238 = vshll.u32 %v229, %v236
    %v239 = vshrl.u32 %v221, %v237
    %v240 = vor.u32 %v238, %v239
    %v241 = vsub.s32 4294967266, %v236
    %v242 = vadd.s32 %v241, 127
    %v243 = vshll.u32 %v242, 23
    %v244 = vor.u32 4788187, %v243
    %v245 = vand.u32 2147483647, %v244
    %v247 = vcvt.s32.f32 %v240
    %v248 = vmul.f32 %v247, %v245
    %v249 = vxor.u32 %v248, 2147483648
    %v250 = vsel %vm167, %v249, %v248
    %v251 = vsub.s32 4, %v227
    %v252 = vsel %vm167, %v251, %v227
    %v253 = vsel %vm166, %v50, %v250
    %v254 = vsel %vm166, 0, %v252
    %v255 = vcosq.f32.pop %v253
    %v256 = vsinq.f32.pop %v253
    %vm257 = vweird.f32 %v50
    %v258 = vand.u32 %v254, 3
    %vm259 = vcmp.lt.s32.totalorder %v258, 2
    %vm260 = vcmp.eq.s32.totalorder %v258, 0
    %v261 = vxor.u32 %v256, 2147483648
    %v262 = vsel %vm260, %v255, %v261
    %vm263 = vcmp.eq.s32.totalorder %v258, 2
    %v264 = vxor.u32 %v255, 2147483648
    %v265 = vsel %vm263, %v264, %v256
    %v266 = vsel %vm259, %v262, %v265
    %v267 = vsel %vm257, nan, %v266
    %v268 = vmul.f32 %v35, %v164
    %v269 = vmul.f32 %v36, %v164
    %v270 = vmul.f32 %v37, %v164
    %v271 = vmul.f32 %v269, %v269
    %v272 = vmul.f32 %v270, %v270
    %v273 = vadd.f32 %v271, %v272
    %v274 = vmul.f32 %v273, 2.0
    %v275 = vsub.f32 1.0, %v274
    %276 = vst [vmem:[#allocation5] sm:$0xff] %v275
    %v277 = vmul.f32 %v268, %v269
    %v278 = vmul.f32 %v270, %v267
    %v279 = vsub.f32 %v277, %v278
    %v280 = vmul.f32 %v279, 2.0
    %s281 = scalar_lea.vmem [#allocation5], 8
    %282 = vst [vmem:[%s281] sm:$0xff] %v280
    %v283 = vmul.f32 %v268, %v270
    %v284 = vmul.f32 %v269, %v267
    %v285 = vadd.f32 %v283, %v284
    %v286 = vmul.f32 %v285, 2.0
    %s287 = scalar_lea.vmem [#allocation5], 16
    %288 = vst [vmem:[%s287] sm:$0xff] %v286
    %v289 = vmul.f32 %v32, 0.2
    %s290 = scalar_lea.vmem [#allocation5], 24
    %291 = vst [vmem:[%s290] sm:$0xff] %v289
    %v292 = vadd.f32 %v277, %v278
    %v293 = vmul.f32 %v292, 2.0
    %s294 = scalar_lea.vmem [#allocation5], 32
    %295 = vst [vmem:[%s294] sm:$0xff] %v293
    %v296 = vmul.f32 %v268, %v268
    %v297 = vadd.f32 %v296, %v272
    %v298 = vmul.f32 %v297, 2.0
    %v299 = vsub.f32 1.0, %v298
    %s300 = scalar_lea.vmem [#allocation5], 40
    %301 = vst [vmem:[%s300] sm:$0xff] %v299
    %v302 = vmul.f32 %v269, %v270
    %v303 = vmul.f32 %v268, %v267
    %v304 = vsub.f32 %v302, %v303
    %v305 = vmul.f32 %v304, 2.0
    %s306 = scalar_lea.vmem [#allocation5], 48
    %307 = vst [vmem:[%s306] sm:$0xff] %v305
    %v308 = vmul.f32 %v33, 0.2
    %s309 = scalar_lea.vmem [#allocation5], 56
    %310 = vst [vmem:[%s309] sm:$0xff] %v308
    %v311 = vsub.f32 %v283, %v284
    %v312 = vmul.f32 %v311, 2.0
    %s313 = scalar_lea.vmem [#allocation5], 64
    %314 = vst [vmem:[%s313] sm:$0xff] %v312
    %v315 = vadd.f32 %v302, %v303
    %v316 = vmul.f32 %v315, 2.0
    %s317 = scalar_lea.vmem [#allocation5], 72
    %318 = vst [vmem:[%s317] sm:$0xff] %v316
    %v319 = vadd.f32 %v296, %v271
    %v320 = vmul.f32 %v319, 2.0
    %v321 = vsub.f32 1.0, %v320
    %s322 = scalar_lea.vmem [#allocation5], 80
    %323 = vst [vmem:[%s322] sm:$0xff] %v321
    %v324 = vmul.f32 %v34, 0.2
    %s325 = scalar_lea.vmem [#allocation5], 88
    %326 = vst [vmem:[%s325] sm:$0xff] %v324
    // Predicated region
    $region10: #{tpu_custom_call.1} parent=1 // pred_check
      _
    $region11: #{tpu_custom_call.1} parent=1 // pred_check_branch
      %328 = sbr.rel (0) target = $region13
    $region12: #{tpu_custom_call.1} parent=1 // pred_region
      %s330 = ssub.s32 1536, 1536
      %331 = vsyncadd [#allocation4], %s330
      %s332 = sshll.u32 [#allocation5], 4
      %s333 = int_to_ptr.vmem [resolvable:$true] %s332
      %338 = dma.vmem_to_hbm [thread:$0]  %s333, 1536, %s1, [#allocation4], 128, 128, 8
    $region13: #{tpu_custom_call.1} parent=1 // pred_fallthru
      _
    // Predicated region
    $region14: #{tpu_custom_call.1} parent=1 // pred_check
      _
    $region15: #{tpu_custom_call.1} parent=1 // pred_check_branch
      %340 = sbr.rel (0) target = $region17
    $region16: #{tpu_custom_call.1} parent=1 // pred_region
      %341 = dma.done [#allocation4], 1536
    $region17: #{tpu_custom_call.1} parent=1 // pred_fallthru
      _
    %342 = vsyncpa [#allocation3], 1
    %343 = vsyncpa [#allocation4], 1

</llo_original>
